<compile_context>
chip_gen: v7x
topology: tpu7x:2x2x1
jax: 0.10.0
libtpu: 0.0.40
codegen_flags: <defaults>
</compile_context>

<pallas_src>
import jax
import jax.numpy as jnp
import numpy as np
from jax.experimental import pallas as pl
from jax.experimental.pallas import tpu as pltpu

_LANES = 128
_SMOOTH = 1e-3
_MAX_TILE_R = 1024   # 1024 x 128 f32 = 512 KiB per input per pipeline buffer


def _dicebce_stats_kernel(p_ref, t_ref, o_ref):
    # p_ref/t_ref: (1, TILE_R, 128) f32 tiles of the flattened inputs.
    # o_ref:       (1, 3, 128) per-batch lane-wise partial sums
    #              (resident in VMEM across the reduction axis).
    k = pl.program_id(1)

    p = p_ref[0]                                    # (TILE_R, 128)
    t = t_ref[0]

    # BCE terms with PyTorch BCELoss-style clamping of log outputs at -100.
    log_p = jnp.maximum(jnp.log(p), -100.0)
    log_1mp = jnp.maximum(jnp.log(1.0 - p), -100.0)
    bce = -(t * log_p + (1.0 - t) * log_1mp)

    # Reduce over the sublane axis only; keep lane-wise partial sums.
    part = jnp.concatenate(
        [
            jnp.sum(p * t, axis=0, keepdims=True),  # intersection
            jnp.sum(p + t, axis=0, keepdims=True),  # pred_area + tgt_area
            jnp.sum(bce, axis=0, keepdims=True),    # bce sum
        ],
        axis=0,
    )                                               # (3, 128)

    @pl.when(k == 0)
    def _():
        o_ref[...] = jnp.zeros_like(o_ref)

    o_ref[0] += part


def dice_bce_loss_pallas(predictions, targets, dice_weight, bce_weight,
                         smooth=_SMOOTH):
    """Forward of DICEBCE(dice_weight, bce_weight)."""
    B = predictions.shape[0]
    M = int(np.prod(predictions.shape[1:]))

    p = predictions.reshape(B, M).astype(jnp.float32)
    t = targets.reshape(B, M).astype(jnp.float32)

    rows = pl.cdiv(M, _LANES)
    tile_r = min(_MAX_TILE_R, ((rows + 7) // 8) * 8)   # sublane-aligned tile
    rows_pad = pl.cdiv(rows, tile_r) * tile_r
    m_pad = rows_pad * _LANES
    if m_pad != M:
        p = jnp.pad(p, ((0, 0), (0, m_pad - M)))
        t = jnp.pad(t, ((0, 0), (0, m_pad - M)))
    p = p.reshape(B, rows_pad, _LANES)
    t = t.reshape(B, rows_pad, _LANES)
    num_tiles = rows_pad // tile_r

    stats = pl.pallas_call(
        _dicebce_stats_kernel,
        grid=(B, num_tiles),
        in_specs=[
            pl.BlockSpec((1, tile_r, _LANES), lambda b, k: (b, k, 0)),
            pl.BlockSpec((1, tile_r, _LANES), lambda b, k: (b, k, 0)),
        ],
        out_specs=pl.BlockSpec((1, 3, _LANES), lambda b, k: (b, 0, 0)),
        out_shape=jax.ShapeDtypeStruct((B, 3, _LANES), jnp.float32),
        compiler_params=pltpu.CompilerParams(
            dimension_semantics=("parallel", "arbitrary")),
    )(p, t)

    # Tiny O(B * 128) finalization in plain JAX.
    intersection = jnp.sum(stats[:, 0, :], axis=-1)        # (B,)
    area_sum = jnp.sum(stats[:, 1, :], axis=-1)            # sum(p) + sum(t)
    bce_sum = jnp.sum(stats[:, 2, :], axis=-1)

    dice = (2.0 * intersection + smooth) / (area_sum + smooth)
    soft_dice_loss = 1.0 - jnp.mean(dice)
    bce_loss = jnp.sum(bce_sum) / (B * M)                  # true element count
    return dice_weight * soft_dice_loss + bce_weight * bce_loss


def dice_bce_loss_ref(predictions, targets, weights=(1.0, 0.4),
                      smooth=_SMOOTH):
    """Pure-JAX reference with the same semantics as the PyTorch module."""
    B = predictions.shape[0]
    p = predictions.reshape(B, -1).astype(jnp.float32)
    t = targets.reshape(B, -1).astype(jnp.float32)

    intersection = jnp.sum(p * t, axis=-1)
    pred_area = jnp.sum(p, axis=-1)
    tgt_area = jnp.sum(t, axis=-1)
    dice = (2.0 * intersection + smooth) / (pred_area + tgt_area + smooth)
    soft_dice_loss = 1.0 - jnp.mean(dice)

    log_p = jnp.maximum(jnp.log(p), -100.0)
    log_1mp = jnp.maximum(jnp.log(1.0 - p), -100.0)
    bce_loss = jnp.mean(-(t * log_p + (1.0 - t) * log_1mp))

    return weights[0] * soft_dice_loss + weights[1] * bce_loss


if __name__ == "__main__":
    # Small shapes consistent with the module: batch=2, channels=4, 16x16.
    B, C, H, W = 2, 4, 16, 16
    dice_weight, bce_weight = 1.0, 0.4     # defaults used by dice_bce_loss

    key = jax.random.PRNGKey(0)
    kp, kt = jax.random.split(key)
    predictions = jax.random.uniform(kp, (B, C, H, W), jnp.float32,
                                     minval=1e-4, maxval=1.0 - 1e-4)
    targets = jax.random.bernoulli(kt, 0.35, (B, C, H, W)).astype(jnp.float32)

    loss_fn = jax.jit(lambda p, t: dice_bce_loss_pallas(
        p, t, dice_weight=dice_weight, bce_weight=bce_weight))
    loss = jax.block_until_ready(loss_fn(predictions, targets))

    loss_ref = dice_bce_loss_ref(predictions, targets,
                                 (dice_weight, bce_weight))
    np.testing.assert_allclose(np.asarray(loss), np.asarray(loss_ref),
                               rtol=1e-5, atol=1e-5)

    print("KERNEL_OK")
</pallas_src>

<mosaic_0001>
module attributes {stable_mosaic.version = 11 : i64} {
  func.func @_dicebce_stats_kernel(%arg0: i32, %arg1: i32, %arg2: memref<1x8x128xf32, #tpu.memory_space<vmem>>, %arg3: memref<1x8x128xf32, #tpu.memory_space<vmem>>, %arg4: memref<1x3x128xf32, #tpu.memory_space<vmem>>) attributes {dimension_semantics = [#tpu.dimension_semantics<parallel>, #tpu.dimension_semantics<arbitrary>], iteration_bounds = array<i64: 2, 1>, scalar_prefetch = 0 : i64, scratch_operands = 0 : i64, tpu.core_type = #tpu.core_type<tc>, window_params = [{transform_indices = @transform_0, window_bounds = array<i64: 1, 8, 128>}, {transform_indices = @transform_1, window_bounds = array<i64: 1, 8, 128>}, {transform_indices = @transform_2, window_bounds = array<i64: 1, 3, 128>}]} {
    %c0 = arith.constant 0 : index
    %c0_0 = arith.constant 0 : index
    %c0_1 = arith.constant 0 : index
    %0 = vector.load %arg2[%c0, %c0_0, %c0_1] : memref<1x8x128xf32, #tpu.memory_space<vmem>>, vector<1x8x128xf32>
    %1 = vector.shape_cast %0 : vector<1x8x128xf32> to vector<8x128xf32>
    %c0_2 = arith.constant 0 : index
    %c0_3 = arith.constant 0 : index
    %c0_4 = arith.constant 0 : index
    %2 = vector.load %arg3[%c0_2, %c0_3, %c0_4] : memref<1x8x128xf32, #tpu.memory_space<vmem>>, vector<1x8x128xf32>
    %3 = vector.shape_cast %2 : vector<1x8x128xf32> to vector<8x128xf32>
    %4 = math.log %1 : vector<8x128xf32>
    %cst = arith.constant -1.000000e+02 : f32
    %5 = vector.broadcast %cst : f32 to vector<8x128xf32>
    %6 = arith.maximumf %4, %5 : vector<8x128xf32>
    %cst_5 = arith.constant 1.000000e+00 : f32
    %7 = vector.broadcast %cst_5 : f32 to vector<8x128xf32>
    %8 = arith.subf %7, %1 : vector<8x128xf32>
    %9 = math.log %8 : vector<8x128xf32>
    %cst_6 = arith.constant -1.000000e+02 : f32
    %10 = vector.broadcast %cst_6 : f32 to vector<8x128xf32>
    %11 = arith.maximumf %9, %10 : vector<8x128xf32>
    %12 = arith.mulf %3, %6 : vector<8x128xf32>
    %cst_7 = arith.constant 1.000000e+00 : f32
    %13 = vector.broadcast %cst_7 : f32 to vector<8x128xf32>
    %14 = arith.subf %13, %3 : vector<8x128xf32>
    %15 = arith.mulf %14, %11 : vector<8x128xf32>
    %16 = arith.addf %12, %15 : vector<8x128xf32>
    %cst_8 = arith.constant 0.000000e+00 : f32
    %17 = vector.broadcast %cst_8 : f32 to vector<8x128xf32>
    %18 = arith.subf %17, %16 : vector<8x128xf32>
    %19 = arith.mulf %1, %3 : vector<8x128xf32>
    %cst_9 = arith.constant dense<0.000000e+00> : vector<128xf32>
    %20 = vector.multi_reduction <add>, %19, %cst_9 [0] : vector<8x128xf32> to vector<128xf32>
    %21 = vector.shape_cast %20 : vector<128xf32> to vector<1x128xf32>
    %22 = arith.addf %1, %3 : vector<8x128xf32>
    %cst_10 = arith.constant dense<0.000000e+00> : vector<128xf32>
    %23 = vector.multi_reduction <add>, %22, %cst_10 [0] : vector<8x128xf32> to vector<128xf32>
    %24 = vector.shape_cast %23 : vector<128xf32> to vector<1x128xf32>
    %cst_11 = arith.constant dense<0.000000e+00> : vector<128xf32>
    %25 = vector.multi_reduction <add>, %18, %cst_11 [0] : vector<8x128xf32> to vector<128xf32>
    %26 = vector.shape_cast %25 : vector<128xf32> to vector<1x128xf32>
    %27 = tpu.concatenate %21, %24, %26 in 0 : vector<1x128xf32>, vector<1x128xf32>, vector<1x128xf32> -> vector<3x128xf32>
    %c0_i32 = arith.constant 0 : i32
    %28 = arith.cmpi eq, %arg1, %c0_i32 : i32
    %29 = arith.extui %28 : i1 to i32
    %c0_i32_12 = arith.constant 0 : i32
    %30 = arith.cmpi ne, %29, %c0_i32_12 : i32
    scf.if %30 {
      %cst_19 = arith.constant 0.000000e+00 : f32
      %37 = vector.broadcast %cst_19 : f32 to vector<1x3x128xf32>
      %c0_20 = arith.constant 0 : index
      %c0_21 = arith.constant 0 : index
      %c0_22 = arith.constant 0 : index
      %38 = vector.load %arg4[%c0_20, %c0_21, %c0_22] : memref<1x3x128xf32, #tpu.memory_space<vmem>>, vector<1x3x128xf32>
      tpu.vector_store %arg4[%c0_20, %c0_21, %c0_22], %37 {strides = array<i32>} : memref<1x3x128xf32, #tpu.memory_space<vmem>>, vector<1x3x128xf32>,
    } else {
    }
    %c0_13 = arith.constant 0 : index
    %c0_14 = arith.constant 0 : index
    %c0_15 = arith.constant 0 : index
    %31 = vector.load %arg4[%c0_13, %c0_14, %c0_15] : memref<1x3x128xf32, #tpu.memory_space<vmem>>, vector<1x3x128xf32>
    %32 = vector.shape_cast %31 : vector<1x3x128xf32> to vector<3x128xf32>
    %33 = arith.addf %32, %27 : vector<3x128xf32>
    %c0_16 = arith.constant 0 : index
    %c0_17 = arith.constant 0 : index
    %c0_18 = arith.constant 0 : index
    %34 = vector.load %arg4[%c0_16, %c0_17, %c0_18] : memref<1x3x128xf32, #tpu.memory_space<vmem>>, vector<1x3x128xf32>
    %35 = vector.shape_cast %34 : vector<1x3x128xf32> to vector<3x128xf32>
    %36 = vector.shape_cast %33 : vector<3x128xf32> to vector<1x3x128xf32>
    tpu.vector_store %arg4[%c0_16, %c0_17, %c0_18], %36 {strides = array<i32>} : memref<1x3x128xf32, #tpu.memory_space<vmem>>, vector<1x3x128xf32>,
    return
  }
  func.func @transform_0(%arg0: i32, %arg1: i32) -> (i32, i32, i32) {
    %c0_i32 = arith.constant 0 : i32
    %c0_i32_0 = arith.constant 0 : i32
    return %arg0, %arg1, %c0_i32 : i32, i32, i32
  }
  func.func @transform_1(%arg0: i32, %arg1: i32) -> (i32, i32, i32) {
    %c0_i32 = arith.constant 0 : i32
    %c0_i32_0 = arith.constant 0 : i32
    return %arg0, %arg1, %c0_i32 : i32, i32, i32
  }
  func.func @transform_2(%arg0: i32, %arg1: i32) -> (i32, i32, i32) {
    %c0_i32 = arith.constant 0 : i32
    %c0_i32_0 = arith.constant 0 : i32
    %c0_i32_1 = arith.constant 0 : i32
    return %arg0, %c0_i32, %c0_i32_0 : i32, i32, i32
  }
}

</mosaic_0001>

<llo_original>
// kernel: _lambda_.1
$region0: #{_lambda_.1}
  #allocation0 [shape = 'u32[]', space=smem, size = 0x4, offset = 0x4, fixed_abs, tag = 'smem constant byte address 0x4 - core index']
  #allocation1 [shape = 'u32[144,128]{1,0:T(1,128)}', space=vmem, size = 0x12000, scoped, tag = 'internal scratch']
  %s0 = inlined_call_operand.vmem [shape: f32[2,8,128], index: 0, kind: input, shape index: {}]
  %s1 = inlined_call_operand.vmem [shape: f32[2,8,128], index: 1, kind: input, shape index: {}]
  %s2 = inlined_call_operand.vmem [shape: f32[2,3,128], index: 2, kind: output, shape index: {}]
  %s3 = sld [smem:[#allocation0]]
  $region45: #{_lambda_.1} parent=0
    _
  %s5 = ssub.s32 1, %s3
  %s6 = scalar_select 0, %s5, %s3
  loop: start=0, step=1, limit=4
  $region2: #{_lambda_.1} parent=0 // loop_pre_header
    _
  $region3: #{_lambda_.1} parent=0 // loop_header
    %s8 = sphi 0, %s12
    %p9 = scmp.ge.s32.totalorder %s8, 4
    %s15 = sphi 0, %s27
    %s16 = sphi 0, %s23
    %s17 = sphi 0, %s15
    %s18 = sphi 0, %s16
    %s19 = sphi 0, %s17
    %s20 = sphi 0, %s18
    %s32 = sphi 0, %s34
    %s35 = sphi 0, %s32
    %s36 = sphi 0, %s35
    %s52 = sphi 0, %s36
    %s60 = sphi 0, %s62
    %s63 = sphi 0, %s60
    %s64 = sphi 0, %s63
    %s80 = sphi 0, %s64
    %s86 = sphi 0, %s88
    %s89 = sphi 0, %s86
    %s90 = sphi 0, %s89
    %s106 = sphi 0, %s90
  $region4: #{_lambda_.1} parent=0 // loop_header_branch
    %11 = sbr.rel (%p9) target = $region8
  $region5: #{_lambda_.1} parent=0 // loop_body
    %s13 = ssub.s32 %s8, 1
    %s14 = ssub.s32 %s8, 2
    %s21 = sadd.s32 1, %s16
    %p22 = scmp.ge.s32.totalorder %s21, 1
    %s23 = scalar_select %p22, 0, %s21
    %s24 = sadd.s32 1, %s15
    %s25 = scalar_select %p22, %s24, %s15
    %p26 = scmp.ge.s32.totalorder %s25, 2
    %s27 = scalar_select %p26, 0, %s25
    %s28 = ssub.s32 %s15, %s27
    %s29 = ssub.s32 %s16, %s23
    %s30 = sor.u32 %s28, %s29
    %p31 = scmp.eq.s32.totalorder %s30, 0
    %s33 = sadd.s32 %s32, 1
    %s34 = scalar_select %p31, %s32, %s33
    %p37 = pneg %p31
    %p38 = scmp.eq.s32.totalorder %s8, 1
    %p39 = por %p37, %p38
    %p40 = scmp.ne.s32.totalorder %s32, %s35
    %p41 = scmp.eq.s32.totalorder %s8, 0
    %p42 = por %p40, %p41
    %p43 = scmp.ne.s32.totalorder %s32, %s35
    %p44 = scmp.eq.s32.totalorder %s13, 1
    %p45 = por %p43, %p44
    %p46 = scmp.ne.s32.totalorder %s35, %s36
    %p47 = scmp.eq.s32.totalorder %s13, 0
    %p48 = por %p46, %p47
    %p49 = scmp.ne.s32.totalorder %s35, %s36
    %p50 = scmp.eq.s32.totalorder %s14, 1
    %p51 = por %p49, %p50
    %p53 = scmp.ne.s32.totalorder %s36, %s52
    %p54 = scmp.eq.s32.totalorder %s14, 0
    %p55 = por %p53, %p54
    %s56 = ssub.s32 %s15, %s27
    %s57 = ssub.s32 %s16, %s23
    %s58 = sor.u32 %s56, %s57
    %p59 = scmp.eq.s32.totalorder %s58, 0
    %s61 = sadd.s32 %s60, 1
    %s62 = scalar_select %p59, %s60, %s61
    %p65 = pneg %p59
    %p66 = scmp.eq.s32.totalorder %s8, 1
    %p67 = por %p65, %p66
    %p68 = scmp.ne.s32.totalorder %s60, %s63
    %p69 = scmp.eq.s32.totalorder %s8, 0
    %p70 = por %p68, %p69
    %p71 = scmp.ne.s32.totalorder %s60, %s63
    %p72 = scmp.eq.s32.totalorder %s13, 1
    %p73 = por %p71, %p72
    %p74 = scmp.ne.s32.totalorder %s63, %s64
    %p75 = scmp.eq.s32.totalorder %s13, 0
    %p76 = por %p74, %p75
    %p77 = scmp.ne.s32.totalorder %s63, %s64
    %p78 = scmp.eq.s32.totalorder %s14, 1
    %p79 = por %p77, %p78
    %p81 = scmp.ne.s32.totalorder %s64, %s80
    %p82 = scmp.eq.s32.totalorder %s14, 0
    %p83 = por %p81, %p82
    %s84 = ssub.s32 %s15, %s27
    %p85 = scmp.eq.s32.totalorder %s84, 0
    %s87 = sadd.s32 %s86, 1
    %s88 = scalar_select %p85, %s86, %s87
    %p91 = pneg %p85
    %p92 = scmp.eq.s32.totalorder %s8, 1
    %p93 = por %p91, %p92
    %p94 = scmp.ne.s32.totalorder %s86, %s89
    %p95 = scmp.eq.s32.totalorder %s8, 0
    %p96 = por %p94, %p95
    %p97 = scmp.ne.s32.totalorder %s86, %s89
    %p98 = scmp.eq.s32.totalorder %s13, 1
    %p99 = por %p97, %p98
    %p100 = scmp.ne.s32.totalorder %s89, %s90
    %p101 = scmp.eq.s32.totalorder %s13, 0
    %p102 = por %p100, %p101
    %p103 = scmp.ne.s32.totalorder %s89, %s90
    %p104 = scmp.eq.s32.totalorder %s14, 1
    %p105 = por %p103, %p104
    %p107 = scmp.ne.s32.totalorder %s90, %s106
    %p108 = scmp.eq.s32.totalorder %s14, 0
    %p109 = por %p107, %p108
    %p110 = scmp.le.s32.totalorder 1, %s8
    %p111 = scmp.lt.s32.totalorder %s8, 3
    %p112 = pnand %p110, %p111
    %p113 = pneg %p112
    // Predicated region
    $region9: #{_lambda_.1} parent=5 // pred_check
      _
    $region10: #{_lambda_.1} parent=5 // pred_check_branch
      %115 = sbr.rel (%p112) target = $region12
    $region11: #{_lambda_.1} parent=5 // pred_region
      %s116 = ssub.s32 %s8, 1
    $region12: #{_lambda_.1} parent=5 // pred_fallthru
      _
    %p117 = scmp.lt.s32.totalorder %s8, 2
    // Predicated region
    $region13: #{_lambda_.1} parent=5 // pred_check
      %p118 = pneg %p117
    $region14: #{_lambda_.1} parent=5 // pred_check_branch
      %120 = sbr.rel (%p118) target = $region16
    $region15: #{_lambda_.1} parent=5 // pred_region
      // Predicated region
      $region17: #{_lambda_.1} parent=15 // pred_check
        %p121 = pneg %p42
      $region18: #{_lambda_.1} parent=15 // pred_check_branch
        %123 = sbr.rel (%p121) target = $region20
      $region19: #{_lambda_.1} parent=15 // pred_region
        %p124 = scmp.lt.s32.totalorder %s15, 1
        %s125 = scalar_select %p124, %s15, 1
        %p126 = scmp.lt.s32.totalorder %s16, 0
        %s127 = scalar_select %p126, %s16, 0
        %s128 = sadd.s32 %s127, %s125
        %s129 = smul.addr %s128, 8
        %s130 = scalar_lea.vmem %s0, %s129
      $region20: #{_lambda_.1} parent=15 // pred_fallthru
        _
      // Predicated region
      $region21: #{_lambda_.1} parent=15 // pred_check
        %p131 = pneg %p70
      $region22: #{_lambda_.1} parent=15 // pred_check_branch
        %133 = sbr.rel (%p131) target = $region24
      $region23: #{_lambda_.1} parent=15 // pred_region
        %p134 = scmp.lt.s32.totalorder %s15, 1
        %s135 = scalar_select %p134, %s15, 1
        %p136 = scmp.lt.s32.totalorder %s16, 0
        %s137 = scalar_select %p136, %s16, 0
        %s138 = sadd.s32 %s137, %s135
        %s139 = smul.addr %s138, 8
        %s140 = scalar_lea.vmem %s1, %s139
      $region24: #{_lambda_.1} parent=15 // pred_fallthru
        _
    $region16: #{_lambda_.1} parent=5 // pred_fallthru
      _
    %p141 = scmp.le.s32.totalorder 1, %s8
    %p142 = scmp.lt.s32.totalorder %s8, 3
    %p143 = pnand %p141, %p142
    %p144 = pneg %p143
    // Predicated region
    $region25: #{_lambda_.1} parent=5 // pred_check
      _
    $region26: #{_lambda_.1} parent=5 // pred_check_branch
      %146 = sbr.rel (%p143) target = $region28
    $region27: #{_lambda_.1} parent=5 // pred_region
      %s147 = ssub.s32 %s8, 1
      %p148 = scmp.lt.s32.totalorder %s17, 1
      %s149 = scalar_select %p148, %s17, 1
      %p150 = scmp.lt.s32.totalorder %s18, 0
      %s151 = scalar_select %p150, %s18, 0
      %s152 = sadd.s32 %s151, %s149
      %s153 = smul.addr %s152, 8
      %s154 = scalar_lea.vmem %s0, %s153
      %p155 = pneg %p48
      %p156 = pneg %p45
      %p157 = scmp.lt.s32.totalorder %s17, 1
      %s158 = scalar_select %p157, %s17, 1
      %p159 = scmp.lt.s32.totalorder %s18, 0
      %s160 = scalar_select %p159, %s18, 0
      %s161 = sadd.s32 %s160, %s158
      %s162 = smul.addr %s161, 8
      %s163 = scalar_lea.vmem %s1, %s162
      %p164 = pneg %p76
      %p165 = pneg %p73
      %p166 = pneg %p102
      %p167 = pneg %p99
      %p168 = scmp.lt.s32.totalorder %s17, 1
      %s169 = scalar_select %p168, %s17, 1
      %s170 = smul.addr %s169, 4
      %s171 = scalar_lea.vmem %s2, %s170
      %p172 = scmp.lt.s32.totalorder %s17, 1
      %s173 = scalar_select %p172, %s17, 1
      %p174 = scmp.lt.s32.totalorder %s18, 0
      %s175 = scalar_select %p174, %s18, 0
      %s176 = sadd.s32 %s175, %s173
      %s177 = smul.addr %s176, 8
      %s178 = scalar_lea.vmem %s0, %s177
      %p179 = scmp.lt.s32.totalorder %s17, 1
      %s180 = scalar_select %p179, %s17, 1
      %p181 = scmp.lt.s32.totalorder %s18, 0
      %s182 = scalar_select %p181, %s18, 0
      %s183 = sadd.s32 %s182, %s180
      %s184 = smul.addr %s183, 8
      %s185 = scalar_lea.vmem %s1, %s184
      %p186 = scmp.lt.s32.totalorder %s17, 1
      %s187 = scalar_select %p186, %s17, 1
      %s188 = smul.addr %s187, 4
      %s189 = scalar_lea.vmem %s2, %s188
      %v190 = vld [vmem:[%s178] sm:$0xff]
      %v191 = vld [vmem:[%s185] sm:$0xff]
      %v192 = vlog2.pop %v190
      %v193 = vmul.f32 %v192, 0.6931472
      %v194 = vmax.f32 %v193, -100.0
      %v195 = vsub.f32 1.0, %v190
      %v196 = vlog2.pop %v195
      %v197 = vmul.f32 %v196, 0.6931472
      %v198 = vmax.f32 %v197, -100.0
      %v199 = vmul.f32 %v191, %v194
      %v200 = vsub.f32 1.0, %v191
      %v201 = vmul.f32 %v200, %v198
      %v202 = vadd.f32 %v199, %v201
      %v203 = vsub.f32 0.0, %v202
      %v204 = vmul.f32 %v190, %v191
      %v205 = vrot.slane %v204, 4
      %v206 = vadd.f32 %v204, %v205
      %v207 = vrot.slane %v206, 2
      %v208 = vadd.f32 %v206, %v207
      %v209 = vrot.slane %v208, 1
      %v210 = vadd.f32 %v208, %v209
      %v211 = vadd.f32 %v190, %v191
      %v212 = vrot.slane %v211, 4
      %v213 = vadd.f32 %v211, %v212
      %v214 = vrot.slane %v213, 2
      %v215 = vadd.f32 %v213, %v214
      %v216 = vrot.slane %v215, 1
      %v217 = vadd.f32 %v215, %v216
      %v218 = vrot.slane %v203, 4
      %v219 = vadd.f32 %v203, %v218
      %v220 = vrot.slane %v219, 2
      %v221 = vadd.f32 %v219, %v220
      %v222 = vrot.slane %v221, 1
      %v223 = vadd.f32 %v221, %v222
      %vm224 = vcmask 1040384
      %v225 = vsel %vm224, %v210, %v217
      %vm226 = vcmask 1041408
      %v227 = vsel %vm226, %v225, %v223
      %p228 = scmp.eq.s32.totalorder %s18, 0
      // Predicated region
      $region29: #{_lambda_.1} parent=27 // pred_check
        %p229 = pneg %p228
      $region30: #{_lambda_.1} parent=27 // pred_check_branch
        %231 = sbr.rel (%p229) target = $region32
      $region31: #{_lambda_.1} parent=27 // pred_region
        %232 = vst [vmem:[%s189] sm:$0x7] 0.0
      $region32: #{_lambda_.1} parent=27 // pred_fallthru
        _
      %v233 = vld [vmem:[%s189] sm:$0x7]
      %v234 = vadd.f32 %v233, %v227
      %235 = vst [vmem:[%s189] sm:$0x7] %v234
      %p236 = scmp.lt.s32.totalorder %s17, 1
      %s237 = scalar_select %p236, %s17, 1
      %s238 = smul.addr %s237, 4
      %s239 = scalar_lea.vmem %s2, %s238
      // Predicated region
      $region33: #{_lambda_.1} parent=27 // pred_check
        %p240 = pneg %p99
      $region34: #{_lambda_.1} parent=27 // pred_check_branch
        %242 = sbr.rel (%p240) target = $region36
      $region35: #{_lambda_.1} parent=27 // pred_region
        _
      $region36: #{_lambda_.1} parent=27 // pred_fallthru
        _
    $region28: #{_lambda_.1} parent=5 // pred_fallthru
      _
    %p243 = scmp.le.s32.totalorder 2, %s8
    // Predicated region
    $region37: #{_lambda_.1} parent=5 // pred_check
      %p244 = pneg %p243
    $region38: #{_lambda_.1} parent=5 // pred_check_branch
      %246 = sbr.rel (%p244) target = $region40
    $region39: #{_lambda_.1} parent=5 // pred_region
      %s247 = ssub.s32 %s8, 2
      // Predicated region
      $region41: #{_lambda_.1} parent=39 // pred_check
        %p248 = pneg %p105
      $region42: #{_lambda_.1} parent=39 // pred_check_branch
        %250 = sbr.rel (%p248) target = $region44
      $region43: #{_lambda_.1} parent=39 // pred_region
        %p251 = scmp.lt.s32.totalorder %s19, 1
        %s252 = scalar_select %p251, %s19, 1
        %s253 = smul.addr %s252, 4
        %s254 = scalar_lea.vmem %s2, %s253
      $region44: #{_lambda_.1} parent=39 // pred_fallthru
        _
    $region40: #{_lambda_.1} parent=5 // pred_fallthru
      _
  $region6: #{_lambda_.1} parent=0 // loop_footer
    %s12 = sadd.s32 1, %s8
  $region7: #{_lambda_.1} parent=0 // loop_footer_branch
    %7 = sbr.rel target = $region3
  $region8: #{_lambda_.1} parent=0 // loop_exit
    _

</llo_original>
